<compile_context>
chip_gen: v6e
topology: v6e:2x2x1
jax: 0.10.0
libtpu: 0.0.40
codegen_flags: <defaults>
</compile_context>

<pallas_src>
import jax
import jax.numpy as jnp
from jax.experimental import pallas as pl
from jax.experimental.pallas import tpu as pltpu


def _round_up(x, m):
    return (x + m - 1) // m * m


def _cdiv(a, b):
    return -(-a // b)


def _prelu(h, a):
    # PReLU(x) = max(0, x) + a * min(0, x)   (jnp.where form matches PyTorch exactly).
    return jnp.where(h > 0, h, a * h)


def fcn1d_kernel(alpha_ref,                       # SMEM: (4,) PReLU slopes (f32)
                 x_ref,                           # VMEM: (TB, F) input tile
                 w1_ref, b1_ref,                  # (F, 512) bf16, (1, 512) f32
                 w2_ref, b2_ref,                  # (512, 256), (1, 256)
                 w3_ref, b3_ref,                  # (256, 128), (1, 128)
                 w4_ref, b4_ref,                  # (128, 128), (1, 128)   (64 padded -> 128)
                 w5_ref, b5_ref,                  # (128, OUT_PAD), (1, OUT_PAD)
                 o_ref):                          # VMEM: (TB, OUT_PAD) f32
    # Cast to bf16 on-chip right before each MXU matmul; accumulate in f32.
    h = x_ref[...].astype(jnp.bfloat16)

    h = jnp.dot(h, w1_ref[...], preferred_element_type=jnp.float32) + b1_ref[...]
    h = _prelu(h, alpha_ref[0])

    h = jnp.dot(h.astype(jnp.bfloat16), w2_ref[...],
                preferred_element_type=jnp.float32) + b2_ref[...]
    h = _prelu(h, alpha_ref[1])

    h = jnp.dot(h.astype(jnp.bfloat16), w3_ref[...],
                preferred_element_type=jnp.float32) + b3_ref[...]
    h = _prelu(h, alpha_ref[2])

    h = jnp.dot(h.astype(jnp.bfloat16), w4_ref[...],
                preferred_element_type=jnp.float32) + b4_ref[...]
    h = _prelu(h, alpha_ref[3])

    h = jnp.dot(h.astype(jnp.bfloat16), w5_ref[...],
                preferred_element_type=jnp.float32) + b5_ref[...]

    o_ref[...] = h.astype(o_ref.dtype)


def _choose_batch_tiling(B, batch_tile):
    """Pick (tb, b_pad) so tb is a multiple of 8, padding waste is < 8 rows per tile,
    and the grid has >= 2 steps once B >= 16 (engages both v7x TensorCores)."""
    batch_tile = max(8, _round_up(int(batch_tile), 8))
    n_tiles = max(1, _cdiv(B, batch_tile))
    if B >= 16:
        n_tiles = max(n_tiles, 2)
    tb = _round_up(_cdiv(B, n_tiles), 8)
    tb = min(tb, batch_tile)
    b_pad = _round_up(B, tb)
    return tb, b_pad


def fcn1d_forward(x, params, *, batch_tile=512):
    """x: [B, ...] arbitrary trailing dims (flattened like torch.flatten(x, 1))."""
    B = x.shape[0]
    x2d = x.reshape(B, -1)                 # keep native dtype (f32 or bf16); cast on-chip
    F = x2d.shape[1]

    (w1, b1, w2, b2, w3, b3, w4, b4, w5, b5, alphas) = params
    out_size = w5.shape[1]

    # --- lane-dense output: pad final layer out to a multiple of 128 ----------
    out_pad = _round_up(out_size, 128)
    if out_pad != out_size:
        w5 = jnp.pad(w5, ((0, 0), (0, out_pad - out_size)))
        b5 = jnp.pad(b5, ((0, 0), (0, out_pad - out_size)))

    # --- pad the 64-wide inner layer to 128 (exact: PReLU(0)=0, zero w5 rows) --
    hid4 = w4.shape[1]
    hid4_pad = _round_up(hid4, 128)
    if hid4_pad != hid4:
        w4 = jnp.pad(w4, ((0, 0), (0, hid4_pad - hid4)))
        b4 = jnp.pad(b4, ((0, 0), (0, hid4_pad - hid4)))
        w5 = jnp.pad(w5, ((0, hid4_pad - hid4), (0, 0)))

    # --- weights in bf16 (halves weight DMA / residency); biases stay f32 -----
    ws = tuple(w.astype(jnp.bfloat16) for w in (w1, w2, w3, w4, w5))
    bs = tuple(b.astype(jnp.float32) for b in (b1, b2, b3, b4, b5))
    alphas = alphas.astype(jnp.float32)

    # --- adaptive batch tiling (bounded padding waste, >=2 steps when B>=16) ---
    tb, b_pad = _choose_batch_tiling(B, batch_tile)
    if b_pad != B:
        x2d = jnp.pad(x2d, ((0, b_pad - B), (0, 0)))
    grid = (b_pad // tb,)

    # --- cost estimate + explicit VMEM budget (actual need + headroom) --------
    dims = (F, 512, 256, 128, hid4_pad, out_pad)
    flops = 2 * b_pad * sum(a * b for a, b in zip(dims[:-1], dims[1:]))
    w_bytes = sum(int(w.size) * 2 for w in ws)
    b_bytes = sum(int(b.size) * 4 for b in bs)
    x_item = x2d.dtype.itemsize
    bytes_accessed = (int(x2d.size) * x_item + w_bytes + b_bytes + b_pad * out_pad * 4)
    inter_width = sum(dims[1:])                                  # all intermediate widths
    vmem_needed = (2 * (w_bytes + b_bytes)                       # resident params (2 bufs)
                   + 2 * tb * F * x_item                         # double-buffered x tiles
                   + 2 * tb * out_pad * 4                        # double-buffered out tiles
                   + tb * inter_width * 6                        # f32 + bf16 intermediates
                   + (4 << 20))                                  # headroom
    vmem_limit = int(min(vmem_needed, 64 * 1024 * 1024))         # cap at v7x physical VMEM

    # Weights/biases: constant index_map -> stay resident across batch tiles.
    param_specs = []
    for w, b in zip(ws, bs):
        param_specs.append(pl.BlockSpec(w.shape, lambda i: (0, 0)))
        param_specs.append(pl.BlockSpec(b.shape, lambda i: (0, 0)))

    out = pl.pallas_call(
        fcn1d_kernel,
        out_shape=jax.ShapeDtypeStruct((b_pad, out_pad), jnp.float32),
        grid=grid,
        in_specs=[
            pl.BlockSpec(memory_space=pltpu.MemorySpace.SMEM),   # PReLU slopes
            pl.BlockSpec((tb, F), lambda i: (i, 0)),             # streamed x tile
            *param_specs,
        ],
        out_specs=pl.BlockSpec((tb, out_pad), lambda i: (i, 0)),
        compiler_params=pltpu.CompilerParams(
            dimension_semantics=("parallel",),
            vmem_limit_bytes=vmem_limit,
        ),
        cost_estimate=pl.CostEstimate(
            flops=flops, transcendentals=0, bytes_accessed=bytes_accessed),
    )(alphas, x2d,
      ws[0], bs[0], ws[1], bs[1], ws[2], bs[2], ws[3], bs[3], ws[4], bs[4])

    # Slice off batch padding and output lane padding.
    return out[:B, :out_size]


def init_params(key, input_size, output_size):
    """Deterministic synthetic init matching FCN_1D layer shapes.

    Weights are stored [in, out] (transposed vs. PyTorch's [out, in]).
    PReLU slopes default to 0.25 (scalar per activation, PyTorch default).
    """
    sizes = [(input_size, 512), (512, 256), (256, 128), (128, 64), (64, output_size)]
    params = []
    for fan_in, fan_out in sizes:
        kw, kb, key = jax.random.split(key, 3)
        bound = 1.0 / jnp.sqrt(fan_in)
        w = jax.random.uniform(kw, (fan_in, fan_out), jnp.float32, -bound, bound)
        b = jax.random.uniform(kb, (1, fan_out), jnp.float32, -bound, bound)
        params += [w, b]
    alphas = jnp.full((4,), 0.25, dtype=jnp.float32)
    params.append(alphas)
    return tuple(params)


def reference_forward(x, params):
    """Pure-JAX f32 reference with the original module's semantics."""
    (w1, b1, w2, b2, w3, b3, w4, b4, w5, b5, alphas) = params
    h = x.reshape(x.shape[0], -1).astype(jnp.float32)
    h = _prelu(h @ w1 + b1, alphas[0])
    h = _prelu(h @ w2 + b2, alphas[1])
    h = _prelu(h @ w3 + b3, alphas[2])
    h = _prelu(h @ w4 + b4, alphas[3])
    return h @ w5 + b5


if __name__ == "__main__":
    key = jax.random.PRNGKey(0)
    kx, kp = jax.random.split(key)

    # Small shapes: batch=2, input is (4, 16) -> flattened input_size=64, output_size=10.
    batch, c, s = 2, 4, 16
    input_size = c * s
    output_size = 10

    x = jax.random.normal(kx, (batch, c, s), dtype=jnp.float32)
    params = init_params(kp, input_size, output_size)

    out = fcn1d_forward(x, params)
    out = jax.block_until_ready(out)

    ref = reference_forward(x, params)
    assert out.shape == (batch, output_size)
    # bf16 weight storage loosens the tolerance vs. the f32 reference.
    assert jnp.allclose(out, ref, atol=2e-2, rtol=2e-2)

    # Also exercise the multi-tile path (>=2 grid steps, adaptive tile, batch padding).
    xb = jax.random.normal(kx, (37, c, s), dtype=jnp.float32)
    outb = jax.block_until_ready(fcn1d_forward(xb, params))
    refb = reference_forward(xb, params)
    assert outb.shape == (37, output_size)
    assert jnp.allclose(outb, refb, atol=2e-2, rtol=2e-2)

    print("KERNEL_OK")
</pallas_src>

<mosaic_0001>
module attributes {stable_mosaic.version = 11 : i64} {
  func.func @fcn1d_kernel(%arg0: i32, %arg1: memref<4xf32, #tpu.memory_space<smem>>, %arg2: memref<8x64xf32, #tpu.memory_space<vmem>>, %arg3: memref<64x512xbf16, #tpu.memory_space<vmem>>, %arg4: memref<1x512xf32, #tpu.memory_space<vmem>>, %arg5: memref<512x256xbf16, #tpu.memory_space<vmem>>, %arg6: memref<1x256xf32, #tpu.memory_space<vmem>>, %arg7: memref<256x128xbf16, #tpu.memory_space<vmem>>, %arg8: memref<1x128xf32, #tpu.memory_space<vmem>>, %arg9: memref<128x128xbf16, #tpu.memory_space<vmem>>, %arg10: memref<1x128xf32, #tpu.memory_space<vmem>>, %arg11: memref<128x128xbf16, #tpu.memory_space<vmem>>, %arg12: memref<1x128xf32, #tpu.memory_space<vmem>>, %arg13: memref<8x128xf32, #tpu.memory_space<vmem>>) attributes {dimension_semantics = [#tpu.dimension_semantics<parallel>], iteration_bounds = array<i64: 1>, scalar_prefetch = 0 : i64, scratch_operands = 0 : i64, tpu.core_type = #tpu.core_type<tc>, window_params = [{transform_indices = @transform_0, window_bounds = array<i64: 4>}, {transform_indices = @transform_1, window_bounds = array<i64: 8, 64>}, {pipeline_mode = #tpu.pipeline_mode<synchronous>, transform_indices = @transform_2, window_bounds = array<i64: 64, 512>}, {pipeline_mode = #tpu.pipeline_mode<synchronous>, transform_indices = @transform_3, window_bounds = array<i64: 1, 512>}, {pipeline_mode = #tpu.pipeline_mode<synchronous>, transform_indices = @transform_4, window_bounds = array<i64: 512, 256>}, {pipeline_mode = #tpu.pipeline_mode<synchronous>, transform_indices = @transform_5, window_bounds = array<i64: 1, 256>}, {pipeline_mode = #tpu.pipeline_mode<synchronous>, transform_indices = @transform_6, window_bounds = array<i64: 256, 128>}, {pipeline_mode = #tpu.pipeline_mode<synchronous>, transform_indices = @transform_7, window_bounds = array<i64: 1, 128>}, {pipeline_mode = #tpu.pipeline_mode<synchronous>, transform_indices = @transform_8, window_bounds = array<i64: 128, 128>}, {pipeline_mode = #tpu.pipeline_mode<synchronous>, transform_indices = @transform_9, window_bounds = array<i64: 1, 128>}, {pipeline_mode = #tpu.pipeline_mode<synchronous>, transform_indices = @transform_10, window_bounds = array<i64: 128, 128>}, {pipeline_mode = #tpu.pipeline_mode<synchronous>, transform_indices = @transform_11, window_bounds = array<i64: 1, 128>}, {transform_indices = @transform_12, window_bounds = array<i64: 8, 128>}]} {
    %c0 = arith.constant 0 : index
    %c0_0 = arith.constant 0 : index
    %0 = vector.load %arg2[%c0, %c0_0] : memref<8x64xf32, #tpu.memory_space<vmem>>, vector<8x64xf32>
    %1 = arith.truncf %0 : vector<8x64xf32> to vector<8x64xbf16>
    %c0_1 = arith.constant 0 : index
    %c0_2 = arith.constant 0 : index
    %2 = vector.load %arg3[%c0_1, %c0_2] : memref<64x512xbf16, #tpu.memory_space<vmem>>, vector<64x512xbf16>
    %cst = arith.constant dense<0.000000e+00> : vector<8x512xf32>
    %3 = tpu.matmul %1, %2, %cst {dimension_numbers = #tpu.dot_dimension_numbers<[1], [0], [0], [1], [0, 0, 1, 1], [], []>} : vector<8x64xbf16>, vector<64x512xbf16>, vector<8x512xf32> -> vector<8x512xf32>
    %c0_3 = arith.constant 0 : index
    %c0_4 = arith.constant 0 : index
    %4 = vector.load %arg4[%c0_3, %c0_4] : memref<1x512xf32, #tpu.memory_space<vmem>>, vector<1x512xf32>
    %5 = vector.broadcast %4 : vector<1x512xf32> to vector<8x512xf32>
    %6 = arith.addf %3, %5 : vector<8x512xf32>
    %c0_5 = arith.constant 0 : index
    %7 = memref.load %arg1[%c0_5] : memref<4xf32, #tpu.memory_space<smem>>
    %cst_6 = arith.constant 0.000000e+00 : f32
    %8 = vector.broadcast %cst_6 : f32 to vector<8x512xf32>
    %9 = arith.cmpf ogt, %6, %8 : vector<8x512xf32>
    %10 = vector.broadcast %7 : f32 to vector<8x512xf32>
    %11 = arith.mulf %10, %6 : vector<8x512xf32>
    %12 = arith.select %9, %6, %11 : vector<8x512xi1>, vector<8x512xf32>
    %13 = arith.truncf %12 : vector<8x512xf32> to vector<8x512xbf16>
    %c0_7 = arith.constant 0 : index
    %c0_8 = arith.constant 0 : index
    %14 = vector.load %arg5[%c0_7, %c0_8] : memref<512x256xbf16, #tpu.memory_space<vmem>>, vector<512x256xbf16>
    %cst_9 = arith.constant dense<0.000000e+00> : vector<8x256xf32>
    %15 = tpu.matmul %13, %14, %cst_9 {dimension_numbers = #tpu.dot_dimension_numbers<[1], [0], [0], [1], [0, 0, 1, 1], [], []>} : vector<8x512xbf16>, vector<512x256xbf16>, vector<8x256xf32> -> vector<8x256xf32>
    %c0_10 = arith.constant 0 : index
    %c0_11 = arith.constant 0 : index
    %16 = vector.load %arg6[%c0_10, %c0_11] : memref<1x256xf32, #tpu.memory_space<vmem>>, vector<1x256xf32>
    %17 = vector.broadcast %16 : vector<1x256xf32> to vector<8x256xf32>
    %18 = arith.addf %15, %17 : vector<8x256xf32>
    %c1 = arith.constant 1 : index
    %19 = memref.load %arg1[%c1] : memref<4xf32, #tpu.memory_space<smem>>
    %cst_12 = arith.constant 0.000000e+00 : f32
    %20 = vector.broadcast %cst_12 : f32 to vector<8x256xf32>
    %21 = arith.cmpf ogt, %18, %20 : vector<8x256xf32>
    %22 = vector.broadcast %19 : f32 to vector<8x256xf32>
    %23 = arith.mulf %22, %18 : vector<8x256xf32>
    %24 = arith.select %21, %18, %23 : vector<8x256xi1>, vector<8x256xf32>
    %25 = arith.truncf %24 : vector<8x256xf32> to vector<8x256xbf16>
    %c0_13 = arith.constant 0 : index
    %c0_14 = arith.constant 0 : index
    %26 = vector.load %arg7[%c0_13, %c0_14] : memref<256x128xbf16, #tpu.memory_space<vmem>>, vector<256x128xbf16>
    %cst_15 = arith.constant dense<0.000000e+00> : vector<8x128xf32>
    %27 = tpu.matmul %25, %26, %cst_15 {dimension_numbers = #tpu.dot_dimension_numbers<[1], [0], [0], [1], [0, 0, 1, 1], [], []>} : vector<8x256xbf16>, vector<256x128xbf16>, vector<8x128xf32> -> vector<8x128xf32>
    %c0_16 = arith.constant 0 : index
    %c0_17 = arith.constant 0 : index
    %28 = vector.load %arg8[%c0_16, %c0_17] : memref<1x128xf32, #tpu.memory_space<vmem>>, vector<1x128xf32>
    %29 = vector.broadcast %28 : vector<1x128xf32> to vector<8x128xf32>
    %30 = arith.addf %27, %29 : vector<8x128xf32>
    %c2 = arith.constant 2 : index
    %31 = memref.load %arg1[%c2] : memref<4xf32, #tpu.memory_space<smem>>
    %cst_18 = arith.constant 0.000000e+00 : f32
    %32 = vector.broadcast %cst_18 : f32 to vector<8x128xf32>
    %33 = arith.cmpf ogt, %30, %32 : vector<8x128xf32>
    %34 = vector.broadcast %31 : f32 to vector<8x128xf32>
    %35 = arith.mulf %34, %30 : vector<8x128xf32>
    %36 = arith.select %33, %30, %35 : vector<8x128xi1>, vector<8x128xf32>
    %37 = arith.truncf %36 : vector<8x128xf32> to vector<8x128xbf16>
    %c0_19 = arith.constant 0 : index
    %c0_20 = arith.constant 0 : index
    %38 = vector.load %arg9[%c0_19, %c0_20] : memref<128x128xbf16, #tpu.memory_space<vmem>>, vector<128x128xbf16>
    %cst_21 = arith.constant dense<0.000000e+00> : vector<8x128xf32>
    %39 = tpu.matmul %37, %38, %cst_21 {dimension_numbers = #tpu.dot_dimension_numbers<[1], [0], [0], [1], [0, 0, 1, 1], [], []>} : vector<8x128xbf16>, vector<128x128xbf16>, vector<8x128xf32> -> vector<8x128xf32>
    %c0_22 = arith.constant 0 : index
    %c0_23 = arith.constant 0 : index
    %40 = vector.load %arg10[%c0_22, %c0_23] : memref<1x128xf32, #tpu.memory_space<vmem>>, vector<1x128xf32>
    %41 = vector.broadcast %40 : vector<1x128xf32> to vector<8x128xf32>
    %42 = arith.addf %39, %41 : vector<8x128xf32>
    %c3 = arith.constant 3 : index
    %43 = memref.load %arg1[%c3] : memref<4xf32, #tpu.memory_space<smem>>
    %cst_24 = arith.constant 0.000000e+00 : f32
    %44 = vector.broadcast %cst_24 : f32 to vector<8x128xf32>
    %45 = arith.cmpf ogt, %42, %44 : vector<8x128xf32>
    %46 = vector.broadcast %43 : f32 to vector<8x128xf32>
    %47 = arith.mulf %46, %42 : vector<8x128xf32>
    %48 = arith.select %45, %42, %47 : vector<8x128xi1>, vector<8x128xf32>
    %49 = arith.truncf %48 : vector<8x128xf32> to vector<8x128xbf16>
    %c0_25 = arith.constant 0 : index
    %c0_26 = arith.constant 0 : index
    %50 = vector.load %arg11[%c0_25, %c0_26] : memref<128x128xbf16, #tpu.memory_space<vmem>>, vector<128x128xbf16>
    %cst_27 = arith.constant dense<0.000000e+00> : vector<8x128xf32>
    %51 = tpu.matmul %49, %50, %cst_27 {dimension_numbers = #tpu.dot_dimension_numbers<[1], [0], [0], [1], [0, 0, 1, 1], [], []>} : vector<8x128xbf16>, vector<128x128xbf16>, vector<8x128xf32> -> vector<8x128xf32>
    %c0_28 = arith.constant 0 : index
    %c0_29 = arith.constant 0 : index
    %52 = vector.load %arg12[%c0_28, %c0_29] : memref<1x128xf32, #tpu.memory_space<vmem>>, vector<1x128xf32>
    %53 = vector.broadcast %52 : vector<1x128xf32> to vector<8x128xf32>
    %54 = arith.addf %51, %53 : vector<8x128xf32>
    %c0_30 = arith.constant 0 : index
    %c0_31 = arith.constant 0 : index
    %55 = vector.load %arg13[%c0_30, %c0_31] : memref<8x128xf32, #tpu.memory_space<vmem>>, vector<8x128xf32>
    tpu.vector_store %arg13[%c0_30, %c0_31], %54 {strides = array<i32>} : memref<8x128xf32, #tpu.memory_space<vmem>>, vector<8x128xf32>,
    return
  }
  func.func @transform_0(%arg0: i32) -> i32 {
    %c0_i32 = arith.constant 0 : i32
    %c0_i32_0 = arith.constant 0 : i32
    return %c0_i32 : i32
  }
  func.func @transform_1(%arg0: i32) -> (i32, i32) {
    %c0_i32 = arith.constant 0 : i32
    %c0_i32_0 = arith.constant 0 : i32
    return %arg0, %c0_i32 : i32, i32
  }
  func.func @transform_2(%arg0: i32) -> (i32, i32) {
    %c0_i32 = arith.constant 0 : i32
    %c0_i32_0 = arith.constant 0 : i32
    %c0_i32_1 = arith.constant 0 : i32
    return %c0_i32, %c0_i32_0 : i32, i32
  }
  func.func @transform_3(%arg0: i32) -> (i32, i32) {
    %c0_i32 = arith.constant 0 : i32
    %c0_i32_0 = arith.constant 0 : i32
    %c0_i32_1 = arith.constant 0 : i32
    return %c0_i32, %c0_i32_0 : i32, i32
  }
  func.func @transform_4(%arg0: i32) -> (i32, i32) {
    %c0_i32 = arith.constant 0 : i32
    %c0_i32_0 = arith.constant 0 : i32
    %c0_i32_1 = arith.constant 0 : i32
    return %c0_i32, %c0_i32_0 : i32, i32
  }
  func.func @transform_5(%arg0: i32) -> (i32, i32) {
    %c0_i32 = arith.constant 0 : i32
    %c0_i32_0 = arith.constant 0 : i32
    %c0_i32_1 = arith.constant 0 : i32
    return %c0_i32, %c0_i32_0 : i32, i32
  }
  func.func @transform_6(%arg0: i32) -> (i32, i32) {
    %c0_i32 = arith.constant 0 : i32
    %c0_i32_0 = arith.constant 0 : i32
    %c0_i32_1 = arith.constant 0 : i32
    return %c0_i32, %c0_i32_0 : i32, i32
  }
  func.func @transform_7(%arg0: i32) -> (i32, i32) {
    %c0_i32 = arith.constant 0 : i32
    %c0_i32_0 = arith.constant 0 : i32
    %c0_i32_1 = arith.constant 0 : i32
    return %c0_i32, %c0_i32_0 : i32, i32
  }
  func.func @transform_8(%arg0: i32) -> (i32, i32) {
    %c0_i32 = arith.constant 0 : i32
    %c0_i32_0 = arith.constant 0 : i32
    %c0_i32_1 = arith.constant 0 : i32
    return %c0_i32, %c0_i32_0 : i32, i32
  }
  func.func @transform_9(%arg0: i32) -> (i32, i32) {
    %c0_i32 = arith.constant 0 : i32
    %c0_i32_0 = arith.constant 0 : i32
    %c0_i32_1 = arith.constant 0 : i32
    return %c0_i32, %c0_i32_0 : i32, i32
  }
  func.func @transform_10(%arg0: i32) -> (i32, i32) {
    %c0_i32 = arith.constant 0 : i32
    %c0_i32_0 = arith.constant 0 : i32
    %c0_i32_1 = arith.constant 0 : i32
    return %c0_i32, %c0_i32_0 : i32, i32
  }
  func.func @transform_11(%arg0: i32) -> (i32, i32) {
    %c0_i32 = arith.constant 0 : i32
    %c0_i32_0 = arith.constant 0 : i32
    %c0_i32_1 = arith.constant 0 : i32
    return %c0_i32, %c0_i32_0 : i32, i32
  }
  func.func @transform_12(%arg0: i32) -> (i32, i32) {
    %c0_i32 = arith.constant 0 : i32
    %c0_i32_0 = arith.constant 0 : i32
    return %arg0, %c0_i32 : i32, i32
  }
}

</mosaic_0001>

<llo_original>
// kernel: tpu_custom_call.1
$region0: #{tpu_custom_call.1}
  #allocation0 [shape = 'u32[]', space=smem, size = 0x4, offset = 0x4, fixed_abs, tag = 'smem constant byte address 0x4 - core index']
  #allocation1 [shape = 'u32[144,128]{1,0:T(1,128)}', space=vmem, size = 0x12000, scoped, tag = 'internal scratch']
  %s0 = inlined_call_operand.hbm [shape: f32[4], index: 0, kind: input, shape index: {}]
  %s1 = inlined_call_operand.hbm [shape: f32[8,64], index: 1, kind: input, shape index: {}]
  %s2 = inlined_call_operand.hbm [shape: bf16[64,512], index: 2, kind: input, shape index: {}]
  %s3 = inlined_call_operand.vmem [shape: f32[1,512], index: 3, kind: input, shape index: {}]
  %s4 = inlined_call_operand.hbm [shape: bf16[512,256], index: 4, kind: input, shape index: {}]
  %s5 = inlined_call_operand.vmem [shape: f32[1,256], index: 5, kind: input, shape index: {}]
  %s6 = inlined_call_operand.hbm [shape: bf16[256,128], index: 6, kind: input, shape index: {}]
  %s7 = inlined_call_operand.vmem [shape: f32[1,128], index: 7, kind: input, shape index: {}]
  %s8 = inlined_call_operand.hbm [shape: bf16[128,128], index: 8, kind: input, shape index: {}]
  %s9 = inlined_call_operand.vmem [shape: f32[1,128], index: 9, kind: input, shape index: {}]
  %s10 = inlined_call_operand.hbm [shape: bf16[128,128], index: 10, kind: input, shape index: {}]
  %s11 = inlined_call_operand.vmem [shape: f32[1,128], index: 11, kind: input, shape index: {}]
  %s12 = inlined_call_operand.hbm [shape: f32[8,128], index: 12, kind: output, shape index: {}]
  %s13 = sld [smem:[#allocation0]]
  $region86: #{tpu_custom_call.1} parent=0
    _
  %s15 = ssub.s32 1, %s13
  %s16 = scalar_select 0, %s15, %s13
  $region1: #{tpu_custom_call.1} parent=0
    #allocation2 [shape = 'u8[512]{0}', space=smem, size = 0x200, scoped, tag = 'input window, operand 0, single buffered']
    #allocation3 [shape = 's32[1]{0}', space=sflag, size = 0x4, scoped, tag = 'scoped memory for tpu_custom_call.1']
    #allocation4 [shape = 's32[1]{0}', space=sflag, size = 0x4, scoped, tag = 'scoped memory for tpu_custom_call.1']
    #allocation5 [shape = 's32[1]{0}', space=sflag, size = 0x4, scoped, tag = 'scoped memory for tpu_custom_call.1']
    #allocation6 [shape = 'u8[4096]{0}', space=vmem, size = 0x1000, scoped, tag = 'input window, operand 1, single buffered']
    #allocation7 [shape = 'u8[65536]{0}', space=vmem, size = 0x10000, scoped, tag = 'input window, operand 2, single buffered']
    #allocation8 [shape = 's32[1]{0}', space=sflag, size = 0x4, scoped, tag = 'scoped memory for tpu_custom_call.1']
    #allocation9 [shape = 'u8[262144]{0}', space=vmem, size = 0x40000, scoped, tag = 'input window, operand 4, single buffered']
    #allocation10 [shape = 'u8[65536]{0}', space=vmem, size = 0x10000, scoped, tag = 'input window, operand 6, single buffered']
    #allocation11 [shape = 's32[1]{0}', space=sflag, size = 0x4, scoped, tag = 'scoped memory for tpu_custom_call.1']
    #allocation12 [shape = 'u8[32768]{0}', space=vmem, size = 0x8000, scoped, tag = 'input window, operand 8, single buffered']
    #allocation13 [shape = 'u8[32768]{0}', space=vmem, size = 0x8000, scoped, tag = 'input window, operand 10, single buffered']
    #allocation14 [shape = 's32[1]{0}', space=sflag, size = 0x4, scoped, tag = 'scoped memory for tpu_custom_call.1']
    #allocation15 [shape = 'u8[4096]{0}', space=vmem, size = 0x1000, scoped, tag = 'output window, operand 0, single buffered']
    %17 = vsyncpa [#allocation5], 0
    %18 = vsyncpa [#allocation3], 0
    %19 = vsyncpa [#allocation8], 0
    %20 = vsyncpa [#allocation11], 0
    %21 = vsyncpa [#allocation14], 0
    %22 = vsyncpa [#allocation4], 0
    // Predicated region
    $region2: #{tpu_custom_call.1} parent=1 // pred_check
      _
    $region3: #{tpu_custom_call.1} parent=1 // pred_check_branch
      %24 = sbr.rel (0) target = $region5
    $region4: #{tpu_custom_call.1} parent=1 // pred_region
      %s26 = ssub.s32 16, 16
      %27 = vsyncadd [#allocation5], %s26
      %30 = dma.hbm_to_smem %s0, 16, [#allocation2], [#allocation5]
    $region5: #{tpu_custom_call.1} parent=1 // pred_fallthru
      _
    // Predicated region
    $region6: #{tpu_custom_call.1} parent=1 // pred_check
      _
    $region7: #{tpu_custom_call.1} parent=1 // pred_check_branch
      %32 = sbr.rel (0) target = $region9
    $region8: #{tpu_custom_call.1} parent=1 // pred_region
      %s34 = ssub.s32 128, 128
      %35 = vsyncadd [#allocation3], %s34
      %s37 = sshll.u32 [#allocation6], 4
      %s38 = int_to_ptr.vmem [resolvable:$true] %s37
      %40 = dma.hbm_to_vmem [thread:$0]  %s1, 128, %s38, [#allocation3]
    $region9: #{tpu_custom_call.1} parent=1 // pred_fallthru
      _
    // Predicated region
    $region10: #{tpu_custom_call.1} parent=1 // pred_check
      _
    $region11: #{tpu_custom_call.1} parent=1 // pred_check_branch
      %42 = sbr.rel (0) target = $region13
    $region12: #{tpu_custom_call.1} parent=1 // pred_region
      %s44 = ssub.s32 2048, 2048
      %45 = vsyncadd [#allocation8], %s44
      %s46 = sshll.u32 [#allocation7], 4
      %s47 = int_to_ptr.vmem [resolvable:$true] %s46
      %52 = dma.hbm_to_vmem [thread:$0]  %s2, 2048, %s47, [#allocation8], 256, 256, 16
    $region13: #{tpu_custom_call.1} parent=1 // pred_fallthru
      _
    // Predicated region
    $region14: #{tpu_custom_call.1} parent=1 // pred_check
      _
    $region15: #{tpu_custom_call.1} parent=1 // pred_check_branch
      %54 = sbr.rel (0) target = $region17
    $region16: #{tpu_custom_call.1} parent=1 // pred_region
      _
    $region17: #{tpu_custom_call.1} parent=1 // pred_fallthru
      _
    // Predicated region
    $region18: #{tpu_custom_call.1} parent=1 // pred_check
      _
    $region19: #{tpu_custom_call.1} parent=1 // pred_check_branch
      %56 = sbr.rel (0) target = $region21
    $region20: #{tpu_custom_call.1} parent=1 // pred_region
      %s58 = ssub.s32 8192, 8192
      %59 = vsyncadd [#allocation8], %s58
      %s60 = sshll.u32 [#allocation9], 4
      %s61 = int_to_ptr.vmem [resolvable:$true] %s60
      %66 = dma.hbm_to_vmem [thread:$0]  %s4, 8192, %s61, [#allocation8], 128, 128, 8
    $region21: #{tpu_custom_call.1} parent=1 // pred_fallthru
      _
    // Predicated region
    $region22: #{tpu_custom_call.1} parent=1 // pred_check
      _
    $region23: #{tpu_custom_call.1} parent=1 // pred_check_branch
      %68 = sbr.rel (0) target = $region25
    $region24: #{tpu_custom_call.1} parent=1 // pred_region
      _
    $region25: #{tpu_custom_call.1} parent=1 // pred_fallthru
      _
    // Predicated region
    $region26: #{tpu_custom_call.1} parent=1 // pred_check
      _
    $region27: #{tpu_custom_call.1} parent=1 // pred_check_branch
      %70 = sbr.rel (0) target = $region29
    $region28: #{tpu_custom_call.1} parent=1 // pred_region
      %s72 = ssub.s32 2048, 2048
      %73 = vsyncadd [#allocation11], %s72
      %s74 = sshll.u32 [#allocation10], 4
      %s75 = int_to_ptr.vmem [resolvable:$true] %s74
      %80 = dma.hbm_to_vmem [thread:$0]  %s6, 2048, %s75, [#allocation11], 64, 64, 4
    $region29: #{tpu_custom_call.1} parent=1 // pred_fallthru
      _
    // Predicated region
    $region30: #{tpu_custom_call.1} parent=1 // pred_check
      _
    $region31: #{tpu_custom_call.1} parent=1 // pred_check_branch
      %82 = sbr.rel (0) target = $region33
    $region32: #{tpu_custom_call.1} parent=1 // pred_region
      _
    $region33: #{tpu_custom_call.1} parent=1 // pred_fallthru
      _
    // Predicated region
    $region34: #{tpu_custom_call.1} parent=1 // pred_check
      _
    $region35: #{tpu_custom_call.1} parent=1 // pred_check_branch
      %84 = sbr.rel (0) target = $region37
    $region36: #{tpu_custom_call.1} parent=1 // pred_region
      %s86 = ssub.s32 1024, 1024
      %87 = vsyncadd [#allocation11], %s86
      %s88 = sshll.u32 [#allocation12], 4
      %s89 = int_to_ptr.vmem [resolvable:$true] %s88
      %94 = dma.hbm_to_vmem [thread:$0]  %s8, 1024, %s89, [#allocation11], 64, 64, 4
    $region37: #{tpu_custom_call.1} parent=1 // pred_fallthru
      _
    // Predicated region
    $region38: #{tpu_custom_call.1} parent=1 // pred_check
      _
    $region39: #{tpu_custom_call.1} parent=1 // pred_check_branch
      %96 = sbr.rel (0) target = $region41
    $region40: #{tpu_custom_call.1} parent=1 // pred_region
      _
    $region41: #{tpu_custom_call.1} parent=1 // pred_fallthru
      _
    // Predicated region
    $region42: #{tpu_custom_call.1} parent=1 // pred_check
      _
    $region43: #{tpu_custom_call.1} parent=1 // pred_check_branch
      %98 = sbr.rel (0) target = $region45
    $region44: #{tpu_custom_call.1} parent=1 // pred_region
      %s100 = ssub.s32 1024, 1024
      %101 = vsyncadd [#allocation14], %s100
      %s102 = sshll.u32 [#allocation13], 4
      %s103 = int_to_ptr.vmem [resolvable:$true] %s102
      %108 = dma.hbm_to_vmem [thread:$0]  %s10, 1024, %s103, [#allocation14], 64, 64, 4
    $region45: #{tpu_custom_call.1} parent=1 // pred_fallthru
      _
    // Predicated region
    $region46: #{tpu_custom_call.1} parent=1 // pred_check
      _
    $region47: #{tpu_custom_call.1} parent=1 // pred_check_branch
      %110 = sbr.rel (0) target = $region49
    $region48: #{tpu_custom_call.1} parent=1 // pred_region
      _
    $region49: #{tpu_custom_call.1} parent=1 // pred_fallthru
      _
    // Predicated region
    $region50: #{tpu_custom_call.1} parent=1 // pred_check
      _
    $region51: #{tpu_custom_call.1} parent=1 // pred_check_branch
      %112 = sbr.rel (0) target = $region53
    $region52: #{tpu_custom_call.1} parent=1 // pred_region
      %113 = dma.done [#allocation5], 16
    $region53: #{tpu_custom_call.1} parent=1 // pred_fallthru
      _
    // Predicated region
    $region54: #{tpu_custom_call.1} parent=1 // pred_check
      _
    $region55: #{tpu_custom_call.1} parent=1 // pred_check_branch
      %115 = sbr.rel (0) target = $region57
    $region56: #{tpu_custom_call.1} parent=1 // pred_region
      %116 = dma.done [#allocation3], 128
    $region57: #{tpu_custom_call.1} parent=1 // pred_fallthru
      _
    // Predicated region
    $region58: #{tpu_custom_call.1} parent=1 // pred_check
      _
    $region59: #{tpu_custom_call.1} parent=1 // pred_check_branch
      %118 = sbr.rel (0) target = $region61
    $region60: #{tpu_custom_call.1} parent=1 // pred_region
      %119 = dma.done [#allocation8], 2048
    $region61: #{tpu_custom_call.1} parent=1 // pred_fallthru
      _
    // Predicated region
    $region62: #{tpu_custom_call.1} parent=1 // pred_check
      _
    $region63: #{tpu_custom_call.1} parent=1 // pred_check_branch
      %121 = sbr.rel (0) target = $region65
    $region64: #{tpu_custom_call.1} parent=1 // pred_region
      %122 = dma.done [#allocation8], 8192
    $region65: #{tpu_custom_call.1} parent=1 // pred_fallthru
      _
    // Predicated region
    $region66: #{tpu_custom_call.1} parent=1 // pred_check
      _
    $region67: #{tpu_custom_call.1} parent=1 // pred_check_branch
      %124 = sbr.rel (0) target = $region69
    $region68: #{tpu_custom_call.1} parent=1 // pred_region
      %125 = dma.done [#allocation11], 2048
    $region69: #{tpu_custom_call.1} parent=1 // pred_fallthru
      _
    // Predicated region
    $region70: #{tpu_custom_call.1} parent=1 // pred_check
      _
    $region71: #{tpu_custom_call.1} parent=1 // pred_check_branch
      %127 = sbr.rel (0) target = $region73
    $region72: #{tpu_custom_call.1} parent=1 // pred_region
      %128 = dma.done [#allocation11], 1024
    $region73: #{tpu_custom_call.1} parent=1 // pred_fallthru
      _
    // Predicated region
    $region74: #{tpu_custom_call.1} parent=1 // pred_check
      _
    $region75: #{tpu_custom_call.1} parent=1 // pred_check_branch
      %130 = sbr.rel (0) target = $region77
    $region76: #{tpu_custom_call.1} parent=1 // pred_region
      %131 = dma.done [#allocation14], 1024
    $region77: #{tpu_custom_call.1} parent=1 // pred_fallthru
      _
    %132 = sfence
    %v134 = vld [vmem:[#allocation6] sm:$0xff]
    %v135 = vpack.c.bf16 %v134, %v134
    %v136 = vld [vmem:[#allocation7] sm:$0xff]
    %v137 = vld [vmem:[#allocation7 + $0x8] sm:$0xff]
    %v138 = vld [vmem:[#allocation7 + $0x10] sm:$0xff]
    %v139 = vld [vmem:[#allocation7 + $0x18] sm:$0xff]
    %v140 = vld [vmem:[#allocation7 + $0x20] sm:$0xff]
    %v141 = vld [vmem:[#allocation7 + $0x28] sm:$0xff]
    %v142 = vld [vmem:[#allocation7 + $0x30] sm:$0xff]
    %v143 = vld [vmem:[#allocation7 + $0x38] sm:$0xff]
    %v144 = vld [vmem:[#allocation7 + $0x40] sm:$0xff]
    %v145 = vld [vmem:[#allocation7 + $0x48] sm:$0xff]
    %v146 = vld [vmem:[#allocation7 + $0x50] sm:$0xff]
    %v147 = vld [vmem:[#allocation7 + $0x58] sm:$0xff]
    %v148 = vld [vmem:[#allocation7 + $0x60] sm:$0xff]
    %v149 = vld [vmem:[#allocation7 + $0x68] sm:$0xff]
    %v150 = vld [vmem:[#allocation7 + $0x70] sm:$0xff]
    %v151 = vld [vmem:[#allocation7 + $0x78] sm:$0xff]
    %v152 = vld [vmem:[%s3] sm:$0xf]
    %v154 = vlaneseq
    %v155 = vshrl.u32 %v154, 7
    %v156 = vsub.s32 0, %v155
    %v157 = vrot.slane %v152, %v156
    %v158 = vlaneseq
    %v159 = vshrl.u32 %v158, 7
    %v160 = vsub.s32 1, %v159
    %v161 = vrot.slane %v152, %v160
    %v162 = vlaneseq
    %v163 = vshrl.u32 %v162, 7
    %v164 = vsub.s32 2, %v163
    %v165 = vrot.slane %v152, %v164
    %v166 = vlaneseq
    %v167 = vshrl.u32 %v166, 7
    %v168 = vsub.s32 3, %v167
    %v169 = vrot.slane %v152, %v168
    %v190 = vunpack.c.l.b16 %v136
    %v191 = vunpack.c.h.b16 %v136
    %v192 = vunpack.c.l.b16 %v137
    %v193 = vunpack.c.h.b16 %v137
    %v194 = vunpack.c.l.b16 %v138
    %v195 = vunpack.c.h.b16 %v138
    %v196 = vunpack.c.l.b16 %v139
    %v197 = vunpack.c.h.b16 %v139
    %v198 = vunpack.c.l.b16 %v140
    %v199 = vunpack.c.h.b16 %v140
    %v200 = vunpack.c.l.b16 %v141
    %v201 = vunpack.c.h.b16 %v141
    %v202 = vunpack.c.l.b16 %v142
    %v203 = vunpack.c.h.b16 %v142
    %v204 = vunpack.c.l.b16 %v143
    %v205 = vunpack.c.h.b16 %v143
    %v206 = vunpack.c.l.b16 %v144
    %v207 = vunpack.c.h.b16 %v144
    %v208 = vunpack.c.l.b16 %v145
    %v209 = vunpack.c.h.b16 %v145
    %v210 = vunpack.c.l.b16 %v146
    %v211 = vunpack.c.h.b16 %v146
    %v212 = vunpack.c.l.b16 %v147
    %v213 = vunpack.c.h.b16 %v147
    %v214 = vunpack.c.l.b16 %v148
    %v215 = vunpack.c.h.b16 %v148
    %v216 = vunpack.c.l.b16 %v149
    %v217 = vunpack.c.h.b16 %v149
    %v218 = vunpack.c.l.b16 %v150
    %v219 = vunpack.c.h.b16 %v150
    %v220 = vunpack.c.l.b16 %v151
    %v221 = vunpack.c.h.b16 %v151
    %v222 = vpack.c.b16 %v194, %v190
    %v223 = vpack.c.b16 %v195, %v191
    %v224 = vpack.c.b16 %v196, %v192
    %v225 = vpack.c.b16 %v197, %v193
    %v226 = vpack.c.b16 %v202, %v198
    %v227 = vpack.c.b16 %v203, %v199
    %v228 = vpack.c.b16 %v204, %v200
    %v229 = vpack.c.b16 %v205, %v201
    %v230 = vpack.c.b16 %v210, %v206
    %v231 = vpack.c.b16 %v211, %v207
    %v232 = vpack.c.b16 %v212, %v208
    %v233 = vpack.c.b16 %v213, %v209
    %v234 = vpack.c.b16 %v218, %v214
    %v235 = vpack.c.b16 %v219, %v215
    %v236 = vpack.c.b16 %v220, %v216
    %v237 = vpack.c.b16 %v221, %v217
    %vm254 = vcmask 523264
    %v256 = vsel %vm254, %v135, 0
    %258 = vmatprep.subr.bf16.mxu0 0
    %259 = vmatpush1.bf16.msra.mxu0 0
    %260 = vmatprep.subr.bf16.mxu0 0
    %261 = vmatpush1.bf16.msra.mxu0 0
    %262 = vmatprep.subr.bf16.mxu0 0
    %263 = vmatpush1.bf16.msra.mxu0 0
    %264 = vmatprep.subr.bf16.mxu0 0
    %265 = vmatpush1.bf16.msra.mxu0 0
    %266 = vmatprep.subr.bf16.mxu0 %v235
    %267 = vmatpush1.bf16.msra.mxu0 %v234
    %268 = vmatprep.subr.bf16.mxu0 %v231
    %269 = vmatpush1.bf16.msra.mxu0 %v230
    %270 = vmatprep.subr.bf16.mxu0 %v227
    %271 = vmatpush1.bf16.msra.mxu0 %v226
    %272 = vmatprep.subr.bf16.mxu0 %v223
    %273 = vmatpush1.bf16.msra.mxu0 %v222
    %274 = vmatprep.subr.bf16.mxu0 0
    %275 = vmatpush2.bf16.msra.mxu0 0
    %276 = vmatprep.subr.bf16.mxu0 0
    %277 = vmatpush2.bf16.msra.mxu0 0
    %278 = vmatprep.subr.bf16.mxu0 0
    %279 = vmatpush2.bf16.msra.mxu0 0
    %280 = vmatprep.subr.bf16.mxu0 0
    %281 = vmatpush2.bf16.msra.mxu0 0
    %282 = vmatprep.subr.bf16.mxu0 0
    %283 = vmatpush2.bf16.msra.mxu0 0
    %284 = vmatprep.subr.bf16.mxu0 0
    %285 = vmatpush2.bf16.msra.mxu0 0
    %286 = vmatprep.subr.bf16.mxu0 0
    %287 = vmatpush2.bf16.msra.mxu0 0
    %288 = vmatprep.subr.bf16.mxu0 0
    %289 = vmatpush2.bf16.msra.mxu0 0
    %290 = vmatprep.mubr.bf16.mxu0 0
    %291 = vmatmul.mubr.bf16.gmra.mxu0 %v256
    %v292 = vpop.f32.mrf.mxu0
    %v293 = vadd.f32 %v157, %v292
    %v294 = vpop.f32.mrf.mxu0
    %v295 = vadd.f32 %v161, %v294
    %v296 = vpop.f32.mrf.mxu0
    %v297 = vpop.f32.mrf.mxu0
    %298 = vdwg.mxu0
    %299 = vmatprep.subr.bf16.mxu0 0
    %300 = vmatpush1.bf16.msra.mxu0 0
    %301 = vmatprep.subr.bf16.mxu0 0
    %302 = vmatpush1.bf16.msra.mxu0 0
    %303 = vmatprep.subr.bf16.mxu0 0
    %304 = vmatpush1.bf16.msra.mxu0 0
    %305 = vmatprep.subr.bf16.mxu0 0
    %306 = vmatpush1.bf16.msra.mxu0 0
    %307 = vmatprep.subr.bf16.mxu0 %v237
    %308 = vmatpush1.bf16.msra.mxu0 %v236
    %309 = vmatprep.subr.bf16.mxu0 %v233
    %310 = vmatpush1.bf16.msra.mxu0 %v232
    %311 = vmatprep.subr.bf16.mxu0 %v229
    %312 = vmatpush1.bf16.msra.mxu0 %v228
    %313 = vmatprep.subr.bf16.mxu0 %v225
    %314 = vmatpush1.bf16.msra.mxu0 %v224
    %315 = vmatprep.subr.bf16.mxu0 0
    %316 = vmatpush2.bf16.msra.mxu0 0
    %317 = vmatprep.subr.bf16.mxu0 0
    %318 = vmatpush2.bf16.msra.mxu0 0
    %319 = vmatprep.subr.bf16.mxu0 0
    %320 = vmatpush2.bf16.msra.mxu0 0
    %321 = vmatprep.subr.bf16.mxu0 0
    %322 = vmatpush2.bf16.msra.mxu0 0
    %323 = vmatprep.subr.bf16.mxu0 0
    %324 = vmatpush2.bf16.msra.mxu0 0
    %325 = vmatprep.subr.bf16.mxu0 0
    %326 = vmatpush2.bf16.msra.mxu0 0
    %327 = vmatprep.subr.bf16.mxu0 0
    %328 = vmatpush2.bf16.msra.mxu0 0
    %329 = vmatprep.subr.bf16.mxu0 0
    %330 = vmatpush2.bf16.msra.mxu0 0
    %331 = vmatprep.mubr.bf16.mxu0 0
    %332 = vmatmul.mubr.bf16.gmra.mxu0 %v256
    %v333 = vpop.f32.mrf.mxu0
    %v334 = vadd.f32 %v165, %v333
    %v335 = vpop.f32.mrf.mxu0
    %v336 = vadd.f32 %v169, %v335
    %v337 = vpop.f32.mrf.mxu0
    %v338 = vpop.f32.mrf.mxu0
    %339 = vdwg.mxu0
    %s340 = sld [smem:[#allocation2]]
    %vm341 = vcmp.gt.f32.partialorder %v293, 0.0
    %vm342 = vcmp.gt.f32.partialorder %v295, 0.0
    %vm343 = vcmp.gt.f32.partialorder %v334, 0.0
    %vm344 = vcmp.gt.f32.partialorder %v336, 0.0
    %v345 = vstv %s340
    %v346 = vmul.f32 %v345, %v293
    %v347 = vmul.f32 %v345, %v295
    %v348 = vmul.f32 %v345, %v334
    %v349 = vmul.f32 %v345, %v336
    %v350 = vsel %vm341, %v293, %v346
    %v351 = vsel %vm342, %v295, %v347
    %v352 = vsel %vm343, %v334, %v348
    %v353 = vsel %vm344, %v336, %v349
    %v354 = vpack.c.bf16 %v350, %v350
    %v355 = vpack.c.bf16 %v351, %v351
    %v356 = vpack.c.bf16 %v352, %v352
    %v357 = vpack.c.bf16 %v353, %v353
    %v358 = vld [vmem:[#allocation9] sm:$0xff]
    %v359 = vld [vmem:[#allocation9 + $0x8] sm:$0xff]
    %v360 = vld [vmem:[#allocation9 + $0x10] sm:$0xff]
    %v361 = vld [vmem:[#allocation9 + $0x18] sm:$0xff]
    %v362 = vld [vmem:[#allocation9 + $0x20] sm:$0xff]
    %v363 = vld [vmem:[#allocation9 + $0x28] sm:$0xff]
    %v364 = vld [vmem:[#allocation9 + $0x30] sm:$0xff]
    %v365 = vld [vmem:[#allocation9 + $0x38] sm:$0xff]
    %v366 = vld [vmem:[#allocation9 + $0x40] sm:$0xff]
    %v367 = vld [vmem:[#allocation9 + $0x48] sm:$0xff]
    %v368 = vld [vmem:[#allocation9 + $0x50] sm:$0xff]
    %v369 = vld [vmem:[#allocation9 + $0x58] sm:$0xff]
    %v370 = vld [vmem:[#allocation9 + $0x60] sm:$0xff]
    %v371 = vld [vmem:[#allocation9 + $0x68] sm:$0xff]
    %v372 = vld [vmem:[#allocation9 + $0x70] sm:$0xff]
    %v373 = vld [vmem:[#allocation9 + $0x78] sm:$0xff]
    %v374 = vld [vmem:[#allocation9 + $0x80] sm:$0xff]
    %v375 = vld [vmem:[#allocation9 + $0x88] sm:$0xff]
    %v376 = vld [vmem:[#allocation9 + $0x90] sm:$0xff]
    %v377 = vld [vmem:[#allocation9 + $0x98] sm:$0xff]
    %v378 = vld [vmem:[#allocation9 + $0xa0] sm:$0xff]
    %v379 = vld [vmem:[#allocation9 + $0xa8] sm:$0xff]
    %v380 = vld [vmem:[#allocation9 + $0xb0] sm:$0xff]
    %v381 = vld [vmem:[#allocation9 + $0xb8] sm:$0xff]
    %v382 = vld [vmem:[#allocation9 + $0xc0] sm:$0xff]
    %v383 = vld [vmem:[#allocation9 + $0xc8] sm:$0xff]
    %v384 = vld [vmem:[#allocation9 + $0xd0] sm:$0xff]
    %v385 = vld [vmem:[#allocation9 + $0xd8] sm:$0xff]
    %v386 = vld [vmem:[#allocation9 + $0xe0] sm:$0xff]
    %v387 = vld [vmem:[#allocation9 + $0xe8] sm:$0xff]
    %v388 = vld [vmem:[#allocation9 + $0xf0] sm:$0xff]
    %v389 = vld [vmem:[#allocation9 + $0xf8] sm:$0xff]
    %v390 = vld [vmem:[#allocation9 + $0x100] sm:$0xff]
    %v391 = vld [vmem:[#allocation9 + $0x108] sm:$0xff]
    %v392 = vld [vmem:[#allocation9 + $0x110] sm:$0xff]
    %v393 = vld [vmem:[#allocation9 + $0x118] sm:$0xff]
    %v394 = vld [vmem:[#allocation9 + $0x120] sm:$0xff]
    %v395 = vld [vmem:[#allocation9 + $0x128] sm:$0xff]
    %v396 = vld [vmem:[#allocation9 + $0x130] sm:$0xff]
    %v397 = vld [vmem:[#allocation9 + $0x138] sm:$0xff]
    %v398 = vld [vmem:[#allocation9 + $0x140] sm:$0xff]
    %v399 = vld [vmem:[#allocation9 + $0x148] sm:$0xff]
    %v400 = vld [vmem:[#allocation9 + $0x150] sm:$0xff]
    %v401 = vld [vmem:[#allocation9 + $0x158] sm:$0xff]
    %v402 = vld [vmem:[#allocation9 + $0x160] sm:$0xff]
    %v403 = vld [vmem:[#allocation9 + $0x168] sm:$0xff]
    %v404 = vld [vmem:[#allocation9 + $0x170] sm:$0xff]
    %v405 = vld [vmem:[#allocation9 + $0x178] sm:$0xff]
    %v406 = vld [vmem:[#allocation9 + $0x180] sm:$0xff]
    %v407 = vld [vmem:[#allocation9 + $0x188] sm:$0xff]
    %v408 = vld [vmem:[#allocation9 + $0x190] sm:$0xff]
    %v409 = vld [vmem:[#allocation9 + $0x198] sm:$0xff]
    %v410 = vld [vmem:[#allocation9 + $0x1a0] sm:$0xff]
    %v411 = vld [vmem:[#allocation9 + $0x1a8] sm:$0xff]
    %v412 = vld [vmem:[#allocation9 + $0x1b0] sm:$0xff]
    %v413 = vld [vmem:[#allocation9 + $0x1b8] sm:$0xff]
    %v414 = vld [vmem:[#allocation9 + $0x1c0] sm:$0xff]
    %v415 = vld [vmem:[#allocation9 + $0x1c8] sm:$0xff]
    %v416 = vld [vmem:[#allocation9 + $0x1d0] sm:$0xff]
    %v417 = vld [vmem:[#allocation9 + $0x1d8] sm:$0xff]
    %v418 = vld [vmem:[#allocation9 + $0x1e0] sm:$0xff]
    %v419 = vld [vmem:[#allocation9 + $0x1e8] sm:$0xff]
    %v420 = vld [vmem:[#allocation9 + $0x1f0] sm:$0xff]
    %v421 = vld [vmem:[#allocation9 + $0x1f8] sm:$0xff]
    %v422 = vld [vmem:[%s5] sm:$0x3]
    %v424 = vlaneseq
    %v425 = vshrl.u32 %v424, 7
    %v426 = vsub.s32 0, %v425
    %v427 = vrot.slane %v422, %v426
    %v428 = vlaneseq
    %v429 = vshrl.u32 %v428, 7
    %v430 = vsub.s32 1, %v429
    %v431 = vrot.slane %v422, %v430
    %v498 = vunpack.c.l.b16 %v358
    %v499 = vunpack.c.h.b16 %v358
    %v500 = vunpack.c.l.b16 %v359
    %v501 = vunpack.c.h.b16 %v359
    %v502 = vunpack.c.l.b16 %v360
    %v503 = vunpack.c.h.b16 %v360
    %v504 = vunpack.c.l.b16 %v361
    %v505 = vunpack.c.h.b16 %v361
    %v506 = vunpack.c.l.b16 %v362
    %v507 = vunpack.c.h.b16 %v362
    %v508 = vunpack.c.l.b16 %v363
    %v509 = vunpack.c.h.b16 %v363
    %v510 = vunpack.c.l.b16 %v364
    %v511 = vunpack.c.h.b16 %v364
    %v512 = vunpack.c.l.b16 %v365
    %v513 = vunpack.c.h.b16 %v365
    %v514 = vunpack.c.l.b16 %v366
    %v515 = vunpack.c.h.b16 %v366
    %v516 = vunpack.c.l.b16 %v367
    %v517 = vunpack.c.h.b16 %v367
    %v518 = vunpack.c.l.b16 %v368
    %v519 = vunpack.c.h.b16 %v368
    %v520 = vunpack.c.l.b16 %v369
    %v521 = vunpack.c.h.b16 %v369
    %v522 = vunpack.c.l.b16 %v370
    %v523 = vunpack.c.h.b16 %v370
    %v524 = vunpack.c.l.b16 %v371
    %v525 = vunpack.c.h.b16 %v371
    %v526 = vunpack.c.l.b16 %v372
    %v527 = vunpack.c.h.b16 %v372
    %v528 = vunpack.c.l.b16 %v373
    %v529 = vunpack.c.h.b16 %v373
    %v530 = vunpack.c.l.b16 %v374
    %v531 = vunpack.c.h.b16 %v374
    %v532 = vunpack.c.l.b16 %v375
    %v533 = vunpack.c.h.b16 %v375
    %v534 = vunpack.c.l.b16 %v376
    %v535 = vunpack.c.h.b16 %v376
    %v536 = vunpack.c.l.b16 %v377
    %v537 = vunpack.c.h.b16 %v377
    %v538 = vunpack.c.l.b16 %v378
    %v539 = vunpack.c.h.b16 %v378
    %v540 = vunpack.c.l.b16 %v379
    %v541 = vunpack.c.h.b16 %v379
    %v542 = vunpack.c.l.b16 %v380
    %v543 = vunpack.c.h.b16 %v380
    %v544 = vunpack.c.l.b16 %v381
    %v545 = vunpack.c.h.b16 %v381
    %v546 = vunpack.c.l.b16 %v382
    %v547 = vunpack.c.h.b16 %v382
    %v548 = vunpack.c.l.b16 %v383
    %v549 = vunpack.c.h.b16 %v383
    %v550 = vunpack.c.l.b16 %v384
    %v551 = vunpack.c.h.b16 %v384
    %v552 = vunpack.c.l.b16 %v385
    %v553 = vunpack.c.h.b16 %v385
    %v554 = vunpack.c.l.b16 %v386
    %v555 = vunpack.c.h.b16 %v386
    %v556 = vunpack.c.l.b16 %v387
    %v557 = vunpack.c.h.b16 %v387
    %v558 = vunpack.c.l.b16 %v388
    %v559 = vunpack.c.h.b16 %v388
    %v560 = vunpack.c.l.b16 %v389
    %v561 = vunpack.c.h.b16 %v389
    %v562 = vunpack.c.l.b16 %v390
    %v563 = vunpack.c.h.b16 %v390
    %v564 = vunpack.c.l.b16 %v391
    %v565 = vunpack.c.h.b16 %v391
    %v566 = vunpack.c.l.b16 %v392
    %v567 = vunpack.c.h.b16 %v392
    %v568 = vunpack.c.l.b16 %v393
    %v569 = vunpack.c.h.b16 %v393
    %v570 = vunpack.c.l.b16 %v394
    %v571 = vunpack.c.h.b16 %v394
    %v572 = vunpack.c.l.b16 %v395
    %v573 = vunpack.c.h.b16 %v395
    %v574 = vunpack.c.l.b16 %v396
    %v575 = vunpack.c.h.b16 %v396
    %v576 = vunpack.c.l.b16 %v397
    %v577 = vunpack.c.h.b16 %v397
    %v578 = vunpack.c.l.b16 %v398
    %v579 = vunpack.c.h.b16 %v398
    %v580 = vunpack.c.l.b16 %v399
    %v581 = vunpack.c.h.b16 %v399
    %v582 = vunpack.c.l.b16 %v400
    %v583 = vunpack.c.h.b16 %v400
    %v584 = vunpack.c.l.b16 %v401
    %v585 = vunpack.c.h.b16 %v401
    %v586 = vunpack.c.l.b16 %v402
    %v587 = vunpack.c.h.b16 %v402
    %v588 = vunpack.c.l.b16 %v403
    %v589 = vunpack.c.h.b16 %v403
    %v590 = vunpack.c.l.b16 %v404
    %v591 = vunpack.c.h.b16 %v404
    %v592 = vunpack.c.l.b16 %v405
    %v593 = vunpack.c.h.b16 %v405
    %v594 = vunpack.c.l.b16 %v406
    %v595 = vunpack.c.h.b16 %v406
    %v596 = vunpack.c.l.b16 %v407
    %v597 = vunpack.c.h.b16 %v407
    %v598 = vunpack.c.l.b16 %v408
    %v599 = vunpack.c.h.b16 %v408
    %v600 = vunpack.c.l.b16 %v409
    %v601 = vunpack.c.h.b16 %v409
    %v602 = vunpack.c.l.b16 %v410
    %v603 = vunpack.c.h.b16 %v410
    %v604 = vunpack.c.l.b16 %v411
    %v605 = vunpack.c.h.b16 %v411
    %v606 = vunpack.c.l.b16 %v412
    %v607 = vunpack.c.h.b16 %v412
    %v608 = vunpack.c.l.b16 %v413
    %v609 = vunpack.c.h.b16 %v413
    %v610 = vunpack.c.l.b16 %v414
    %v611 = vunpack.c.h.b16 %v414
    %v612 = vunpack.c.l.b16 %v415
    %v613 = vunpack.c.h.b16 %v415
    %v614 = vunpack.c.l.b16 %v416
    %v615 = vunpack.c.h.b16 %v416
    %v616 = vunpack.c.l.b16 %v417
    %v617 = vunpack.c.h.b16 %v417
    %v618 = vunpack.c.l.b16 %v418
    %v619 = vunpack.c.h.b16 %v418
    %v620 = vunpack.c.l.b16 %v419
    %v621 = vunpack.c.h.b16 %v419
    %v622 = vunpack.c.l.b16 %v420
    %v623 = vunpack.c.h.b16 %v420
    %v624 = vunpack.c.l.b16 %v421
    %v625 = vunpack.c.h.b16 %v421
    %v626 = vpack.c.b16 %v500, %v498
    %v627 = vpack.c.b16 %v501, %v499
    %v628 = vpack.c.b16 %v504, %v502
    %v629 = vpack.c.b16 %v505, %v503
    %v630 = vpack.c.b16 %v508, %v506
    %v631 = vpack.c.b16 %v509, %v507
    %v632 = vpack.c.b16 %v512, %v510
    %v633 = vpack.c.b16 %v513, %v511
    %v634 = vpack.c.b16 %v516, %v514
    %v635 = vpack.c.b16 %v517, %v515
    %v636 = vpack.c.b16 %v520, %v518
    %v637 = vpack.c.b16 %v521, %v519
    %v638 = vpack.c.b16 %v524, %v522
    %v639 = vpack.c.b16 %v525, %v523
    %v640 = vpack.c.b16 %v528, %v526
    %v641 = vpack.c.b16 %v529, %v527
    %v642 = vpack.c.b16 %v532, %v530
    %v643 = vpack.c.b16 %v533, %v531
    %v644 = vpack.c.b16 %v536, %v534
    %v645 = vpack.c.b16 %v537, %v535
    %v646 = vpack.c.b16 %v540, %v538
    %v647 = vpack.c.b16 %v541, %v539
    %v648 = vpack.c.b16 %v544, %v542
    %v649 = vpack.c.b16 %v545, %v543
    %v650 = vpack.c.b16 %v548, %v546
    %v651 = vpack.c.b16 %v549, %v547
    %v652 = vpack.c.b16 %v552, %v550
    %v653 = vpack.c.b16 %v553, %v551
    %v654 = vpack.c.b16 %v556, %v554
    %v655 = vpack.c.b16 %v557, %v555
    %v656 = vpack.c.b16 %v560, %v558
    %v657 = vpack.c.b16 %v561, %v559
    %v658 = vpack.c.b16 %v564, %v562
    %v659 = vpack.c.b16 %v565, %v563
    %v660 = vpack.c.b16 %v568, %v566
    %v661 = vpack.c.b16 %v569, %v567
    %v662 = vpack.c.b16 %v572, %v570
    %v663 = vpack.c.b16 %v573, %v571
    %v664 = vpack.c.b16 %v576, %v574
    %v665 = vpack.c.b16 %v577, %v575
    %v666 = vpack.c.b16 %v580, %v578
    %v667 = vpack.c.b16 %v581, %v579
    %v668 = vpack.c.b16 %v584, %v582
    %v669 = vpack.c.b16 %v585, %v583
    %v670 = vpack.c.b16 %v588, %v586
    %v671 = vpack.c.b16 %v589, %v587
    %v672 = vpack.c.b16 %v592, %v590
    %v673 = vpack.c.b16 %v593, %v591
    %v674 = vpack.c.b16 %v596, %v594
    %v675 = vpack.c.b16 %v597, %v595
    %v676 = vpack.c.b16 %v600, %v598
    %v677 = vpack.c.b16 %v601, %v599
    %v678 = vpack.c.b16 %v604, %v602
    %v679 = vpack.c.b16 %v605, %v603
    %v680 = vpack.c.b16 %v608, %v606
    %v681 = vpack.c.b16 %v609, %v607
    %v682 = vpack.c.b16 %v612, %v610
    %v683 = vpack.c.b16 %v613, %v611
    %v684 = vpack.c.b16 %v616, %v614
    %v685 = vpack.c.b16 %v617, %v615
    %v686 = vpack.c.b16 %v620, %v618
    %v687 = vpack.c.b16 %v621, %v619
    %v688 = vpack.c.b16 %v624, %v622
    %v689 = vpack.c.b16 %v625, %v623
    %754 = vmatprep.subr.bf16.mxu0 %v641
    %755 = vmatpush1.bf16.msra.mxu0 %v640
    %756 = vmatprep.subr.bf16.mxu0 %v639
    %757 = vmatpush1.bf16.msra.mxu0 %v638
    %758 = vmatprep.subr.bf16.mxu0 %v637
    %759 = vmatpush1.bf16.msra.mxu0 %v636
    %760 = vmatprep.subr.bf16.mxu0 %v635
    %761 = vmatpush1.bf16.msra.mxu0 %v634
    %762 = vmatprep.subr.bf16.mxu0 %v633
    %763 = vmatpush1.bf16.msra.mxu0 %v632
    %764 = vmatprep.subr.bf16.mxu0 %v631
    %765 = vmatpush1.bf16.msra.mxu0 %v630
    %766 = vmatprep.subr.bf16.mxu0 %v629
    %767 = vmatpush1.bf16.msra.mxu0 %v628
    %768 = vmatprep.subr.bf16.mxu0 %v627
    %769 = vmatpush1.bf16.msra.mxu0 %v626
    %770 = vmatprep.subr.bf16.mxu0 %v657
    %771 = vmatpush2.bf16.msra.mxu0 %v656
    %772 = vmatprep.subr.bf16.mxu0 %v655
    %773 = vmatpush2.bf16.msra.mxu0 %v654
    %774 = vmatprep.subr.bf16.mxu0 %v653
    %775 = vmatpush2.bf16.msra.mxu0 %v652
    %776 = vmatprep.subr.bf16.mxu0 %v651
    %777 = vmatpush2.bf16.msra.mxu0 %v650
    %778 = vmatprep.subr.bf16.mxu0 %v649
    %779 = vmatpush2.bf16.msra.mxu0 %v648
    %780 = vmatprep.subr.bf16.mxu0 %v647
    %781 = vmatpush2.bf16.msra.mxu0 %v646
    %782 = vmatprep.subr.bf16.mxu0 %v645
    %783 = vmatpush2.bf16.msra.mxu0 %v644
    %784 = vmatprep.subr.bf16.mxu0 %v643
    %785 = vmatpush2.bf16.msra.mxu0 %v642
    %786 = vmatprep.mubr.bf16.mxu0 %v355
    %787 = vmatmul.mubr.bf16.gmra.mxu0 %v354
    %v788 = vpop.f32.mrf.mxu0
    %v789 = vadd.f32 %v427, %v788
    %v790 = vpop.f32.mrf.mxu0
    %v791 = vadd.f32 %v431, %v790
    %v792 = vpop.f32.mrf.mxu0
    %v793 = vpop.f32.mrf.mxu0
    %794 = vdwg.mxu0
    %795 = vmatprep.subr.bf16.mxu0 %v673
    %796 = vmatpush1.bf16.msra.mxu0 %v672
    %797 = vmatprep.subr.bf16.mxu0 %v671
    %798 = vmatpush1.bf16.msra.mxu0 %v670
    %799 = vmatprep.subr.bf16.mxu0 %v669
    %800 = vmatpush1.bf16.msra.mxu0 %v668
    %801 = vmatprep.subr.bf16.mxu0 %v667
    %802 = vmatpush1.bf16.msra.mxu0 %v666
    %803 = vmatprep.subr.bf16.mxu0 %v665
    %804 = vmatpush1.bf16.msra.mxu0 %v664
    %805 = vmatprep.subr.bf16.mxu0 %v663
    %806 = vmatpush1.bf16.msra.mxu0 %v662
    %807 = vmatprep.subr.bf16.mxu0 %v661
    %808 = vmatpush1.bf16.msra.mxu0 %v660
    %809 = vmatprep.subr.bf16.mxu0 %v659
    %810 = vmatpush1.bf16.msra.mxu0 %v658
    %811 = vmatprep.subr.bf16.mxu0 %v689
    %812 = vmatpush2.bf16.msra.mxu0 %v688
    %813 = vmatprep.subr.bf16.mxu0 %v687
    %814 = vmatpush2.bf16.msra.mxu0 %v686
    %815 = vmatprep.subr.bf16.mxu0 %v685
    %816 = vmatpush2.bf16.msra.mxu0 %v684
    %817 = vmatprep.subr.bf16.mxu0 %v683
    %818 = vmatpush2.bf16.msra.mxu0 %v682
    %819 = vmatprep.subr.bf16.mxu0 %v681
    %820 = vmatpush2.bf16.msra.mxu0 %v680
    %821 = vmatprep.subr.bf16.mxu0 %v679
    %822 = vmatpush2.bf16.msra.mxu0 %v678
    %823 = vmatprep.subr.bf16.mxu0 %v677
    %824 = vmatpush2.bf16.msra.mxu0 %v676
    %825 = vmatprep.subr.bf16.mxu0 %v675
    %826 = vmatpush2.bf16.msra.mxu0 %v674
    %827 = vmatprep.mubr.bf16.mxu0 %v357
    %828 = vmatmul.mubr.bf16.gmra.mxu0 %v356
    %v829 = vpop.f32.mrf.mxu0
    %v830 = vadd.f32 %v789, %v829
    %v831 = vpop.f32.mrf.mxu0
    %v832 = vadd.f32 %v791, %v831
    %v833 = vpop.f32.mrf.mxu0
    %v834 = vpop.f32.mrf.mxu0
    %835 = vdwg.mxu0
    %s836 = sld [smem:[#allocation2 + $0x1]]
    %vm837 = vcmp.gt.f32.partialorder %v830, 0.0
    %vm838 = vcmp.gt.f32.partialorder %v832, 0.0
    %v839 = vstv %s836
    %v840 = vmul.f32 %v839, %v830
    %v841 = vmul.f32 %v839, %v832
    %v842 = vsel %vm837, %v830, %v840
    %v843 = vsel %vm838, %v832, %v841
    %v844 = vpack.c.bf16 %v842, %v842
    %v845 = vpack.c.bf16 %v843, %v843
    %v846 = vld [vmem:[#allocation10] sm:$0xf]
    %v847 = vld [vmem:[#allocation10 + $0x4] sm:$0xf]
    %v848 = vld [vmem:[#allocation10 + $0x8] sm:$0xf]
    %v849 = vld [vmem:[#allocation10 + $0xc] sm:$0xf]
    %v850 = vld [vmem:[#allocation10 + $0x10] sm:$0xf]
    %v851 = vld [vmem:[#allocation10 + $0x14] sm:$0xf]
    %v852 = vld [vmem:[#allocation10 + $0x18] sm:$0xf]
    %v853 = vld [vmem:[#allocation10 + $0x1c] sm:$0xf]
    %v854 = vld [vmem:[#allocation10 + $0x20] sm:$0xf]
    %v855 = vld [vmem:[#allocation10 + $0x24] sm:$0xf]
    %v856 = vld [vmem:[#allocation10 + $0x28] sm:$0xf]
    %v857 = vld [vmem:[#allocation10 + $0x2c] sm:$0xf]
    %v858 = vld [vmem:[#allocation10 + $0x30] sm:$0xf]
    %v859 = vld [vmem:[#allocation10 + $0x34] sm:$0xf]
    %v860 = vld [vmem:[#allocation10 + $0x38] sm:$0xf]
    %v861 = vld [vmem:[#allocation10 + $0x3c] sm:$0xf]
    %v862 = vld [vmem:[#allocation10 + $0x40] sm:$0xf]
    %v863 = vld [vmem:[#allocation10 + $0x44] sm:$0xf]
    %v864 = vld [vmem:[#allocation10 + $0x48] sm:$0xf]
    %v865 = vld [vmem:[#allocation10 + $0x4c] sm:$0xf]
    %v866 = vld [vmem:[#allocation10 + $0x50] sm:$0xf]
    %v867 = vld [vmem:[#allocation10 + $0x54] sm:$0xf]
    %v868 = vld [vmem:[#allocation10 + $0x58] sm:$0xf]
    %v869 = vld [vmem:[#allocation10 + $0x5c] sm:$0xf]
    %v870 = vld [vmem:[#allocation10 + $0x60] sm:$0xf]
    %v871 = vld [vmem:[#allocation10 + $0x64] sm:$0xf]
    %v872 = vld [vmem:[#allocation10 + $0x68] sm:$0xf]
    %v873 = vld [vmem:[#allocation10 + $0x6c] sm:$0xf]
    %v874 = vld [vmem:[#allocation10 + $0x70] sm:$0xf]
    %v875 = vld [vmem:[#allocation10 + $0x74] sm:$0xf]
    %v876 = vld [vmem:[#allocation10 + $0x78] sm:$0xf]
    %v877 = vld [vmem:[#allocation10 + $0x7c] sm:$0xf]
    %v878 = vld [vmem:[%s7] sm:$0x1]
    %v880 = vlaneseq
    %v881 = vshrl.u32 %v880, 7
    %v882 = vsub.s32 0, %v881
    %v883 = vrot.slane %v878, %v882
    %v917 = vunpack.c.l.b16 %v846
    %v918 = vunpack.c.l.b16 %v847
    %v919 = vunpack.c.l.b16 %v848
    %v920 = vunpack.c.l.b16 %v849
    %v921 = vunpack.c.l.b16 %v850
    %v922 = vunpack.c.l.b16 %v851
    %v923 = vunpack.c.l.b16 %v852
    %v924 = vunpack.c.l.b16 %v853
    %v925 = vunpack.c.l.b16 %v854
    %v926 = vunpack.c.l.b16 %v855
    %v927 = vunpack.c.l.b16 %v856
    %v928 = vunpack.c.l.b16 %v857
    %v929 = vunpack.c.l.b16 %v858
    %v930 = vunpack.c.l.b16 %v859
    %v931 = vunpack.c.l.b16 %v860
    %v932 = vunpack.c.l.b16 %v861
    %v933 = vunpack.c.l.b16 %v862
    %v934 = vunpack.c.l.b16 %v863
    %v935 = vunpack.c.l.b16 %v864
    %v936 = vunpack.c.l.b16 %v865
    %v937 = vunpack.c.l.b16 %v866
    %v938 = vunpack.c.l.b16 %v867
    %v939 = vunpack.c.l.b16 %v868
    %v940 = vunpack.c.l.b16 %v869
    %v941 = vunpack.c.l.b16 %v870
    %v942 = vunpack.c.l.b16 %v871
    %v943 = vunpack.c.l.b16 %v872
    %v944 = vunpack.c.l.b16 %v873
    %v945 = vunpack.c.l.b16 %v874
    %v946 = vunpack.c.l.b16 %v875
    %v947 = vunpack.c.l.b16 %v876
    %v948 = vunpack.c.l.b16 %v877
    %v949 = vpack.c.b16 %v918, %v917
    %v950 = vpack.c.b16 %v920, %v919
    %v951 = vpack.c.b16 %v922, %v921
    %v952 = vpack.c.b16 %v924, %v923
    %v953 = vpack.c.b16 %v926, %v925
    %v954 = vpack.c.b16 %v928, %v927
    %v955 = vpack.c.b16 %v930, %v929
    %v956 = vpack.c.b16 %v932, %v931
    %v957 = vpack.c.b16 %v934, %v933
    %v958 = vpack.c.b16 %v936, %v935
    %v959 = vpack.c.b16 %v938, %v937
    %v960 = vpack.c.b16 %v940, %v939
    %v961 = vpack.c.b16 %v942, %v941
    %v962 = vpack.c.b16 %v944, %v943
    %v963 = vpack.c.b16 %v946, %v945
    %v964 = vpack.c.b16 %v948, %v947
    %981 = vmatprep.subr.bf16.mxu0 0
    %982 = vmatpush1.bf16.msra.mxu0 %v956
    %983 = vmatprep.subr.bf16.mxu0 0
    %984 = vmatpush1.bf16.msra.mxu0 %v955
    %985 = vmatprep.subr.bf16.mxu0 0
    %986 = vmatpush1.bf16.msra.mxu0 %v954
    %987 = vmatprep.subr.bf16.mxu0 0
    %988 = vmatpush1.bf16.msra.mxu0 %v953
    %989 = vmatprep.subr.bf16.mxu0 0
    %990 = vmatpush1.bf16.msra.mxu0 %v952
    %991 = vmatprep.subr.bf16.mxu0 0
    %992 = vmatpush1.bf16.msra.mxu0 %v951
    %993 = vmatprep.subr.bf16.mxu0 0
    %994 = vmatpush1.bf16.msra.mxu0 %v950
    %995 = vmatprep.subr.bf16.mxu0 0
    %996 = vmatpush1.bf16.msra.mxu0 %v949
    %997 = vmatprep.subr.bf16.mxu0 0
    %998 = vmatpush2.bf16.msra.mxu0 %v964
    %999 = vmatprep.subr.bf16.mxu0 0
    %1000 = vmatpush2.bf16.msra.mxu0 %v963
    %1001 = vmatprep.subr.bf16.mxu0 0
    %1002 = vmatpush2.bf16.msra.mxu0 %v962
    %1003 = vmatprep.subr.bf16.mxu0 0
    %1004 = vmatpush2.bf16.msra.mxu0 %v961
    %1005 = vmatprep.subr.bf16.mxu0 0
    %1006 = vmatpush2.bf16.msra.mxu0 %v960
    %1007 = vmatprep.subr.bf16.mxu0 0
    %1008 = vmatpush2.bf16.msra.mxu0 %v959
    %1009 = vmatprep.subr.bf16.mxu0 0
    %1010 = vmatpush2.bf16.msra.mxu0 %v958
    %1011 = vmatprep.subr.bf16.mxu0 0
    %1012 = vmatpush2.bf16.msra.mxu0 %v957
    %1013 = vmatprep.mubr.bf16.mxu0 %v845
    %1014 = vmatmul.mubr.bf16.gmra.mxu0 %v844
    %v1015 = vpop.f32.mrf.mxu0
    %v1016 = vadd.f32 %v883, %v1015
    %v1017 = vpop.f32.mrf.mxu0
    %v1018 = vpop.f32.mrf.mxu0
    %v1019 = vpop.f32.mrf.mxu0
    %1020 = vdwg.mxu0
    %s1021 = sld [smem:[#allocation2 + $0x2]]
    %vm1022 = vcmp.gt.f32.partialorder %v1016, 0.0
    %v1023 = vstv %s1021
    %v1024 = vmul.f32 %v1023, %v1016
    %v1025 = vsel %vm1022, %v1016, %v1024
    %v1026 = vpack.c.bf16 %v1025, %v1025
    %v1027 = vld [vmem:[#allocation12] sm:$0xf]
    %v1028 = vld [vmem:[#allocation12 + $0x4] sm:$0xf]
    %v1029 = vld [vmem:[#allocation12 + $0x8] sm:$0xf]
    %v1030 = vld [vmem:[#allocation12 + $0xc] sm:$0xf]
    %v1031 = vld [vmem:[#allocation12 + $0x10] sm:$0xf]
    %v1032 = vld [vmem:[#allocation12 + $0x14] sm:$0xf]
    %v1033 = vld [vmem:[#allocation12 + $0x18] sm:$0xf]
    %v1034 = vld [vmem:[#allocation12 + $0x1c] sm:$0xf]
    %v1035 = vld [vmem:[#allocation12 + $0x20] sm:$0xf]
    %v1036 = vld [vmem:[#allocation12 + $0x24] sm:$0xf]
    %v1037 = vld [vmem:[#allocation12 + $0x28] sm:$0xf]
    %v1038 = vld [vmem:[#allocation12 + $0x2c] sm:$0xf]
    %v1039 = vld [vmem:[#allocation12 + $0x30] sm:$0xf]
    %v1040 = vld [vmem:[#allocation12 + $0x34] sm:$0xf]
    %v1041 = vld [vmem:[#allocation12 + $0x38] sm:$0xf]
    %v1042 = vld [vmem:[#allocation12 + $0x3c] sm:$0xf]
    %v1043 = vld [vmem:[%s9] sm:$0x1]
    %v1045 = vlaneseq
    %v1046 = vshrl.u32 %v1045, 7
    %v1047 = vsub.s32 0, %v1046
    %v1048 = vrot.slane %v1043, %v1047
    %v1066 = vunpack.c.l.b16 %v1027
    %v1067 = vunpack.c.l.b16 %v1028
    %v1068 = vunpack.c.l.b16 %v1029
    %v1069 = vunpack.c.l.b16 %v1030
    %v1070 = vunpack.c.l.b16 %v1031
    %v1071 = vunpack.c.l.b16 %v1032
    %v1072 = vunpack.c.l.b16 %v1033
    %v1073 = vunpack.c.l.b16 %v1034
    %v1074 = vunpack.c.l.b16 %v1035
    %v1075 = vunpack.c.l.b16 %v1036
    %v1076 = vunpack.c.l.b16 %v1037
    %v1077 = vunpack.c.l.b16 %v1038
    %v1078 = vunpack.c.l.b16 %v1039
    %v1079 = vunpack.c.l.b16 %v1040
    %v1080 = vunpack.c.l.b16 %v1041
    %v1081 = vunpack.c.l.b16 %v1042
    %v1082 = vpack.c.b16 %v1067, %v1066
    %v1083 = vpack.c.b16 %v1069, %v1068
    %v1084 = vpack.c.b16 %v1071, %v1070
    %v1085 = vpack.c.b16 %v1073, %v1072
    %v1086 = vpack.c.b16 %v1075, %v1074
    %v1087 = vpack.c.b16 %v1077, %v1076
    %v1088 = vpack.c.b16 %v1079, %v1078
    %v1089 = vpack.c.b16 %v1081, %v1080
    %1098 = vmatprep.subr.bf16.mxu0 0
    %1099 = vmatpush1.bf16.msra.mxu0 %v1089
    %1100 = vmatprep.subr.bf16.mxu0 0
    %1101 = vmatpush1.bf16.msra.mxu0 %v1088
    %1102 = vmatprep.subr.bf16.mxu0 0
    %1103 = vmatpush1.bf16.msra.mxu0 %v1087
    %1104 = vmatprep.subr.bf16.mxu0 0
    %1105 = vmatpush1.bf16.msra.mxu0 %v1086
    %1106 = vmatprep.subr.bf16.mxu0 0
    %1107 = vmatpush1.bf16.msra.mxu0 %v1085
    %1108 = vmatprep.subr.bf16.mxu0 0
    %1109 = vmatpush1.bf16.msra.mxu0 %v1084
    %1110 = vmatprep.subr.bf16.mxu0 0
    %1111 = vmatpush1.bf16.msra.mxu0 %v1083
    %1112 = vmatprep.subr.bf16.mxu0 0
    %1113 = vmatpush1.bf16.msra.mxu0 %v1082
    %1114 = vmatprep.subr.bf16.mxu0 0
    %1115 = vmatpush2.bf16.msra.mxu0 0
    %1116 = vmatprep.subr.bf16.mxu0 0
    %1117 = vmatpush2.bf16.msra.mxu0 0
    %1118 = vmatprep.subr.bf16.mxu0 0
    %1119 = vmatpush2.bf16.msra.mxu0 0
    %1120 = vmatprep.subr.bf16.mxu0 0
    %1121 = vmatpush2.bf16.msra.mxu0 0
    %1122 = vmatprep.subr.bf16.mxu0 0
    %1123 = vmatpush2.bf16.msra.mxu0 0
    %1124 = vmatprep.subr.bf16.mxu0 0
    %1125 = vmatpush2.bf16.msra.mxu0 0
    %1126 = vmatprep.subr.bf16.mxu0 0
    %1127 = vmatpush2.bf16.msra.mxu0 0
    %1128 = vmatprep.subr.bf16.mxu0 0
    %1129 = vmatpush2.bf16.msra.mxu0 0
    %1130 = vmatprep.mubr.bf16.mxu0 0
    %1131 = vmatmul.mubr.bf16.gmra.mxu0 %v1026
    %v1132 = vpop.f32.mrf.mxu0
    %v1133 = vadd.f32 %v1048, %v1132
    %v1134 = vpop.f32.mrf.mxu0
    %v1135 = vpop.f32.mrf.mxu0
    %v1136 = vpop.f32.mrf.mxu0
    %1137 = vdwg.mxu0
    %s1138 = sld [smem:[#allocation2 + $0x3]]
    %vm1139 = vcmp.gt.f32.partialorder %v1133, 0.0
    %v1140 = vstv %s1138
    %v1141 = vmul.f32 %v1140, %v1133
    %v1142 = vsel %vm1139, %v1133, %v1141
    %v1143 = vpack.c.bf16 %v1142, %v1142
    %v1144 = vld [vmem:[#allocation13] sm:$0xf]
    %v1145 = vld [vmem:[#allocation13 + $0x4] sm:$0xf]
    %v1146 = vld [vmem:[#allocation13 + $0x8] sm:$0xf]
    %v1147 = vld [vmem:[#allocation13 + $0xc] sm:$0xf]
    %v1148 = vld [vmem:[#allocation13 + $0x10] sm:$0xf]
    %v1149 = vld [vmem:[#allocation13 + $0x14] sm:$0xf]
    %v1150 = vld [vmem:[#allocation13 + $0x18] sm:$0xf]
    %v1151 = vld [vmem:[#allocation13 + $0x1c] sm:$0xf]
    %v1152 = vld [vmem:[#allocation13 + $0x20] sm:$0xf]
    %v1153 = vld [vmem:[#allocation13 + $0x24] sm:$0xf]
    %v1154 = vld [vmem:[#allocation13 + $0x28] sm:$0xf]
    %v1155 = vld [vmem:[#allocation13 + $0x2c] sm:$0xf]
    %v1156 = vld [vmem:[#allocation13 + $0x30] sm:$0xf]
    %v1157 = vld [vmem:[#allocation13 + $0x34] sm:$0xf]
    %v1158 = vld [vmem:[#allocation13 + $0x38] sm:$0xf]
    %v1159 = vld [vmem:[#allocation13 + $0x3c] sm:$0xf]
    %v1160 = vld [vmem:[%s11] sm:$0x1]
    %v1162 = vlaneseq
    %v1163 = vshrl.u32 %v1162, 7
    %v1164 = vsub.s32 0, %v1163
    %v1165 = vrot.slane %v1160, %v1164
    %v1183 = vunpack.c.l.b16 %v1144
    %v1184 = vunpack.c.l.b16 %v1145
    %v1185 = vunpack.c.l.b16 %v1146
    %v1186 = vunpack.c.l.b16 %v1147
    %v1187 = vunpack.c.l.b16 %v1148
    %v1188 = vunpack.c.l.b16 %v1149
    %v1189 = vunpack.c.l.b16 %v1150
    %v1190 = vunpack.c.l.b16 %v1151
    %v1191 = vunpack.c.l.b16 %v1152
    %v1192 = vunpack.c.l.b16 %v1153
    %v1193 = vunpack.c.l.b16 %v1154
    %v1194 = vunpack.c.l.b16 %v1155
    %v1195 = vunpack.c.l.b16 %v1156
    %v1196 = vunpack.c.l.b16 %v1157
    %v1197 = vunpack.c.l.b16 %v1158
    %v1198 = vunpack.c.l.b16 %v1159
    %v1199 = vpack.c.b16 %v1184, %v1183
    %v1200 = vpack.c.b16 %v1186, %v1185
    %v1201 = vpack.c.b16 %v1188, %v1187
    %v1202 = vpack.c.b16 %v1190, %v1189
    %v1203 = vpack.c.b16 %v1192, %v1191
    %v1204 = vpack.c.b16 %v1194, %v1193
    %v1205 = vpack.c.b16 %v1196, %v1195
    %v1206 = vpack.c.b16 %v1198, %v1197
    %1215 = vmatprep.subr.bf16.mxu0 0
    %1216 = vmatpush1.bf16.msra.mxu0 %v1206
    %1217 = vmatprep.subr.bf16.mxu0 0
    %1218 = vmatpush1.bf16.msra.mxu0 %v1205
    %1219 = vmatprep.subr.bf16.mxu0 0
    %1220 = vmatpush1.bf16.msra.mxu0 %v1204
    %1221 = vmatprep.subr.bf16.mxu0 0
    %1222 = vmatpush1.bf16.msra.mxu0 %v1203
    %1223 = vmatprep.subr.bf16.mxu0 0
    %1224 = vmatpush1.bf16.msra.mxu0 %v1202
    %1225 = vmatprep.subr.bf16.mxu0 0
    %1226 = vmatpush1.bf16.msra.mxu0 %v1201
    %1227 = vmatprep.subr.bf16.mxu0 0
    %1228 = vmatpush1.bf16.msra.mxu0 %v1200
    %1229 = vmatprep.subr.bf16.mxu0 0
    %1230 = vmatpush1.bf16.msra.mxu0 %v1199
    %1231 = vmatprep.subr.bf16.mxu0 0
    %1232 = vmatpush2.bf16.msra.mxu0 0
    %1233 = vmatprep.subr.bf16.mxu0 0
    %1234 = vmatpush2.bf16.msra.mxu0 0
    %1235 = vmatprep.subr.bf16.mxu0 0
    %1236 = vmatpush2.bf16.msra.mxu0 0
    %1237 = vmatprep.subr.bf16.mxu0 0
    %1238 = vmatpush2.bf16.msra.mxu0 0
    %1239 = vmatprep.subr.bf16.mxu0 0
    %1240 = vmatpush2.bf16.msra.mxu0 0
    %1241 = vmatprep.subr.bf16.mxu0 0
    %1242 = vmatpush2.bf16.msra.mxu0 0
    %1243 = vmatprep.subr.bf16.mxu0 0
    %1244 = vmatpush2.bf16.msra.mxu0 0
    %1245 = vmatprep.subr.bf16.mxu0 0
    %1246 = vmatpush2.bf16.msra.mxu0 0
    %1247 = vmatprep.mubr.bf16.mxu0 0
    %1248 = vmatmul.mubr.bf16.gmra.mxu0 %v1143
    %v1249 = vpop.f32.mrf.mxu0
    %v1250 = vadd.f32 %v1165, %v1249
    %v1251 = vpop.f32.mrf.mxu0
    %v1252 = vpop.f32.mrf.mxu0
    %v1253 = vpop.f32.mrf.mxu0
    %1254 = vdwg.mxu0
    %1255 = vst [vmem:[#allocation15] sm:$0xff] %v1250
    // Predicated region
    $region78: #{tpu_custom_call.1} parent=1 // pred_check
      _
    $region79: #{tpu_custom_call.1} parent=1 // pred_check_branch
      %1257 = sbr.rel (0) target = $region81
    $region80: #{tpu_custom_call.1} parent=1 // pred_region
      %s1259 = ssub.s32 128, 128
      %1260 = vsyncadd [#allocation4], %s1259
      %s1262 = sshll.u32 [#allocation15], 4
      %s1263 = int_to_ptr.vmem [resolvable:$true] %s1262
      %1265 = dma.vmem_to_hbm [thread:$0]  %s1263, 128, %s12, [#allocation4]
    $region81: #{tpu_custom_call.1} parent=1 // pred_fallthru
      _
    // Predicated region
    $region82: #{tpu_custom_call.1} parent=1 // pred_check
      _
    $region83: #{tpu_custom_call.1} parent=1 // pred_check_branch
      %1267 = sbr.rel (0) target = $region85
    $region84: #{tpu_custom_call.1} parent=1 // pred_region
      %1268 = dma.done [#allocation4], 128
    $region85: #{tpu_custom_call.1} parent=1 // pred_fallthru
      _
    %1269 = vsyncpa [#allocation3], 1
    %1270 = vsyncpa [#allocation8], 1
    %1271 = vsyncpa [#allocation11], 1
    %1272 = vsyncpa [#allocation14], 1
    %1273 = vsyncpa [#allocation4], 1
    %1274 = vsyncpa [#allocation5], 1

</llo_original>
